<compile_context>
chip_gen: v6e
topology: v6e:2x2x1
jax: 0.10.0
libtpu: 0.0.40
codegen_flags: <defaults>
</compile_context>

<pallas_src>
import functools

import jax
import jax.numpy as jnp
from jax import lax
from jax.experimental import pallas as pl
from jax.experimental.pallas import tpu as pltpu


def _ceil_to(x, m):
    return -(-x // m) * m


def _floor_to(x, m):
    return (x // m) * m


# ---------------------------------------------------------------------------
# Kernel 1: streaming reduction over N (PyTorch dim=1): max / mean of x1, x2.
# ---------------------------------------------------------------------------
def _reduce_kernel(x1_ref, x2_ref, o_ref, *, inv_n, n_total, tile_n, need_mask):
    # x1_ref, x2_ref: (tile_n, tile_m); o_ref: (4, tile_m), resident over N.
    n = pl.program_id(2)
    n_last = pl.num_programs(2) - 1

    x1 = x1_ref[...].astype(jnp.float32)   # accumulate in f32 (bf16 inputs ok)
    x2 = x2_ref[...].astype(jnp.float32)

    if need_mask:
        # Last tile may run past N (cdiv grid): mask OOB rows so they are
        # identity for both max (-inf) and sum (0).
        row = lax.broadcasted_iota(jnp.int32, x1.shape, 0)
        valid = row < (n_total - n * tile_n)
        x1m = jnp.where(valid, x1, -jnp.inf)
        x2m = jnp.where(valid, x2, -jnp.inf)
        x1s = jnp.where(valid, x1, 0.0)
        x2s = jnp.where(valid, x2, 0.0)
    else:
        x1m, x2m, x1s, x2s = x1, x2, x1, x2

    m1 = jnp.max(x1m, axis=0, keepdims=True)   # (1, tile_m)
    m2 = jnp.max(x2m, axis=0, keepdims=True)
    s1 = jnp.sum(x1s, axis=0, keepdims=True)
    s2 = jnp.sum(x2s, axis=0, keepdims=True)
    step = jnp.concatenate([m1, m2, s1, s2], axis=0)       # (4, tile_m)

    # Rows 0/1 merge with max, rows 2/3 with add -- whole-block select, so the
    # resident output gets ONE unmasked load + ONE unmasked store per step.
    is_max_row = lax.broadcasted_iota(jnp.int32, step.shape, 0) < 2

    @pl.when(n == 0)
    def _():
        o_ref[...] = step

    @pl.when(n > 0)
    def _():
        cur = o_ref[...]
        o_ref[...] = jnp.where(is_max_row, jnp.maximum(cur, step), cur + step)

    @pl.when(n == n_last)
    def _():
        # mean = running sum * (1/N), applied once at the end.
        cur = o_ref[...]
        o_ref[...] = jnp.where(is_max_row, cur, cur * inv_n)


def _reduce_over_n(x1r, x2r, *, target_block_bytes=4 << 20):
    B, N, M = x1r.shape
    eb = jnp.dtype(x1r.dtype).itemsize
    # Dtype-dependent sublane multiple: 8 (f32), 16 (bf16/f16), 32 (int8/fp8).
    sub = max(8, 32 // eb)

    # Lane-axis split: gives both v7x TensorCores work when B == 1.
    if B == 1 and M % 256 == 0:
        tile_m, n_m = M // 2, 2
    else:
        tile_m, n_m = M, 1

    # N-axis (reduction) tile: largest block under the ~4 MiB-per-input budget
    # (safe on v5e 16 MiB / v6e 32 MiB / v7x 32 MiB scoped once the limit is
    # raised below), rounded to the dtype-legal sublane multiple.  Partial
    # last tile is handled by in-kernel masking (cdiv grid), never by falling
    # back to the full N axis.
    cap = max(1, target_block_bytes // max(1, tile_m * eb))
    if cap >= N:
        tile_n, n_n, need_mask = N, 1, False
    else:
        tile_n = max(sub, _floor_to(cap, sub))
        n_n = -(-N // tile_n)
        need_mask = (N % tile_n) != 0

    kernel = functools.partial(_reduce_kernel, inv_n=1.0 / N, n_total=N,
                               tile_n=tile_n, need_mask=need_mask)

    # 2 inputs x 2 pipeline buffers x block + double-buffered output + slack.
    need = 2 * 2 * tile_n * tile_m * eb + 2 * 4 * tile_m * 4 + (8 << 20)
    vmem_limit = int(min(max(need, 32 << 20), 56 << 20))   # <= v7x 64 MiB phys

    # TODO(synk): on v7x, pltpu.CORE_PARALLEL / pl.core_map could force an
    # explicit per-core split; plain "parallel" semantics are kept here so the
    # same kernel compiles on single-TC v5e/v6e.
    return pl.pallas_call(
        kernel,
        out_shape=jax.ShapeDtypeStruct((B, 4, M), jnp.float32),
        grid_spec=pltpu.PrefetchScalarGridSpec(
            num_scalar_prefetch=0,
            grid=(B, n_m, n_n),
            in_specs=[
                pl.BlockSpec((None, tile_n, tile_m), lambda b, m, n: (b, n, m)),
                pl.BlockSpec((None, tile_n, tile_m), lambda b, m, n: (b, n, m)),
            ],
            out_specs=pl.BlockSpec((None, 4, tile_m), lambda b, m, n: (b, 0, m)),
        ),
        compiler_params=pltpu.CompilerParams(
            dimension_semantics=("parallel", "parallel", "arbitrary"),
            vmem_limit_bytes=vmem_limit),
    )(x1r, x2r)


# ---------------------------------------------------------------------------
# Kernel 2: softmax(features) + 3x (Linear -> ReLU), transposed / lane-dense.
# ---------------------------------------------------------------------------
def _head_kernel(s_ref, w1_ref, b1_ref, w2_ref, b2_ref, w3_ref, b3_ref, o_ref):
    s = s_ref[...]                                          # (4, Tc) f32
    # Softmax over the feature axis (rows) == nn.Softmax(dim=4).
    z = s - jnp.max(s, axis=0, keepdims=True)
    e = jnp.exp(z)
    # TODO(synk): approx reciprocal (EUP) trades a few ulp vs an exact divide.
    p = e * pl.reciprocal(jnp.sum(e, axis=0, keepdims=True), approx=True)

    # TODO(synk): nn.Dropout(0.3) is identity at inference; training-mode
    # stochastic dropout is not implemented here.
    # Weights arrive as bf16; bf16 x bf16 -> f32 accumulation is the native
    # single-pass MXU path on all generations.
    h1 = jnp.maximum(
        jnp.dot(w1_ref[...], p.astype(jnp.bfloat16),
                preferred_element_type=jnp.float32) + b1_ref[...], 0.0)
    h2 = jnp.maximum(
        jnp.dot(w2_ref[...], h1.astype(jnp.bfloat16),
                preferred_element_type=jnp.float32) + b2_ref[...], 0.0)
    h3 = jnp.maximum(
        jnp.dot(w3_ref[...], h2.astype(jnp.bfloat16),
                preferred_element_type=jnp.float32) + b3_ref[...], 0.0)
    o_ref[...] = h3                                          # (1, Tc)


def _head(s, params):
    # s: (4, C) f32, features on the sublane axis, C = B*4*D2*D3 on lanes.
    w1, b1, w2, b2, w3, b3 = params
    F, C = s.shape
    lane = 128
    # tile_c = 512 keeps the (64, tile_c) f32 intermediates at ~32 vregs
    # (no spills) while staying lane-dense for unmasked output stores.
    tile_c = min(512, _ceil_to(C, lane))
    c_pad = _ceil_to(C, tile_c)
    if c_pad != C:
        s = jnp.pad(s, ((0, 0), (0, c_pad - C)))  # pad cols are sliced off

    # Cast weights to bf16 once in the wrapper; biases stay f32.
    w1b, w2b, w3b = (w.astype(jnp.bfloat16) for w in (w1, w2, w3))

    def resident(shape):
        # Constant index_map -> block stays resident, not re-DMA'd per step.
        return pl.BlockSpec(shape, lambda j: (0, 0))

    out = pl.pallas_call(
        _head_kernel,
        out_shape=jax.ShapeDtypeStruct((1, c_pad), jnp.float32),
        grid_spec=pltpu.PrefetchScalarGridSpec(
            num_scalar_prefetch=0,
            grid=(c_pad // tile_c,),
            in_specs=[
                pl.BlockSpec((F, tile_c), lambda j: (0, j)),
                resident(w1b.shape), resident(b1.shape),
                resident(w2b.shape), resident(b2.shape),
                resident(w3b.shape), resident(b3.shape),
            ],
            out_specs=pl.BlockSpec((1, tile_c), lambda j: (0, j)),
        ),
        compiler_params=pltpu.CompilerParams(
            dimension_semantics=("parallel",)),
    )(s, w1b, b1, w2b, b2, w3b, b3)
    return out[:, :C]


# ---------------------------------------------------------------------------
# Wrapper / params / reference
# ---------------------------------------------------------------------------
def init_params(key):
    """Deterministic params in PyTorch nn.Linear layout: W (out, in), b (out, 1)."""
    k1, k2, k3, k4, k5, k6 = jax.random.split(key, 6)

    def lin(kw, kb, fan_in, fan_out):
        bound = 1.0 / (fan_in ** 0.5)
        w = jax.random.uniform(kw, (fan_out, fan_in), jnp.float32, -bound, bound)
        b = jax.random.uniform(kb, (fan_out, 1), jnp.float32, -bound, bound)
        return w, b

    w1, b1 = lin(k1, k2, 4, 64)
    w2, b2 = lin(k3, k4, 64, 64)
    w3, b3 = lin(k5, k6, 64, 1)
    return (w1, b1, w2, b2, w3, b3)


def mlp_forward(x1, x2, x3, params):
    del x3  # unused in the reference forward
    B, N, D2, D3, F = x1.shape
    assert F == 4, "linear1 expects last-dim features == 4"
    assert N >= 1, "max/mean over dim=1 require N >= 1"
    M = D2 * D3 * F

    # Free, contiguous reshapes only -- no HBM transpose of the big inputs.
    # (If the caller can store x1/x2 as bf16, kernel 1 -- pure HBM bandwidth --
    # gets a ~2x win; f32 accumulation inside the kernel is kept either way.)
    x1r = x1.reshape(B, N, M)
    x2r = x2.reshape(B, N, M)

    red = _reduce_over_n(x1r, x2r)                     # (B, 4, M) f32

    # Tiny relayout of the reduced stats only:
    # (B, stat, D2, D3, F) -> (F, B*stat*D2*D3) so the head is lane-dense.
    C = B * 4 * D2 * D3
    s = jnp.transpose(red.reshape(B, 4, D2, D3, F),
                      (4, 0, 1, 2, 3)).reshape(F, C)

    out = _head(s, params)                             # (1, C)
    return out.reshape(B, 4, D2, D3, 1)


def _reference(x1, x2, params):
    """Pure-JAX reference for sanity checking."""
    w1, b1, w2, b2, w3, b3 = params
    m1 = jnp.max(x1, axis=1, keepdims=True)
    m2 = jnp.max(x2, axis=1, keepdims=True)
    a1 = jnp.mean(x1, axis=1, keepdims=True)
    a2 = jnp.mean(x2, axis=1, keepdims=True)
    x = jnp.concatenate([m1, m2, a1, a2], axis=1)
    x = jax.nn.softmax(x, axis=4)
    x = jax.nn.relu(x @ w1.T + b1[:, 0])
    x = jax.nn.relu(x @ w2.T + b2[:, 0])
    x = jax.nn.relu(x @ w3.T + b3[:, 0])
    return x


if __name__ == "__main__":
    key = jax.random.PRNGKey(0)
    kp, k1, k2, k3 = jax.random.split(key, 4)

    params = init_params(kp)

    B, N, D2, D3, F = 2, 8, 4, 4, 4
    x1 = jax.random.normal(k1, (B, N, D2, D3, F), jnp.float32)
    x2 = jax.random.normal(k2, (B, N, D2, D3, F), jnp.float32)
    x3 = jax.random.normal(k3, (B, N, D2, D3, F), jnp.float32)  # unused

    fwd = jax.jit(mlp_forward)
    out = fwd(x1, x2, x3, params)
    out = jax.block_until_ready(out)

    ref = _reference(x1, x2, params)
    assert out.shape == (B, 4, D2, D3, 1), out.shape
    # Tolerance accounts for bf16 MXU operands in the head and the EUP
    # approximate reciprocal in the softmax denominator.
    assert jnp.allclose(out, ref, atol=1e-2, rtol=1e-2), (
        "mismatch vs reference: max abs err "
        f"{jnp.max(jnp.abs(out - ref))}")

    print("KERNEL_OK")
</pallas_src>

<mosaic_0001>
module attributes {stable_mosaic.version = 11 : i64} {
  func.func @_reduce_kernel(%arg0: i32, %arg1: i32, %arg2: i32, %arg3: memref<1x8x64xf32, #tpu.memory_space<vmem>>, %arg4: memref<1x8x64xf32, #tpu.memory_space<vmem>>, %arg5: memref<1x4x64xf32, #tpu.memory_space<vmem>>) attributes {dimension_semantics = [#tpu.dimension_semantics<parallel>, #tpu.dimension_semantics<parallel>, #tpu.dimension_semantics<arbitrary>], iteration_bounds = array<i64: 2, 1, 1>, scalar_prefetch = 0 : i64, scratch_operands = 0 : i64, tpu.core_type = #tpu.core_type<tc>, window_params = [{transform_indices = @transform_0, window_bounds = array<i64: 1, 8, 64>}, {transform_indices = @transform_1, window_bounds = array<i64: 1, 8, 64>}, {transform_indices = @transform_2, window_bounds = array<i64: 1, 4, 64>}]} {
    %c0 = arith.constant 0 : index
    %c0_0 = arith.constant 0 : index
    %c0_1 = arith.constant 0 : index
    %0 = vector.load %arg3[%c0, %c0_0, %c0_1] : memref<1x8x64xf32, #tpu.memory_space<vmem>>, vector<1x8x64xf32>
    %1 = vector.shape_cast %0 : vector<1x8x64xf32> to vector<8x64xf32>
    %c0_2 = arith.constant 0 : index
    %c0_3 = arith.constant 0 : index
    %c0_4 = arith.constant 0 : index
    %2 = vector.load %arg4[%c0_2, %c0_3, %c0_4] : memref<1x8x64xf32, #tpu.memory_space<vmem>>, vector<1x8x64xf32>
    %3 = vector.shape_cast %2 : vector<1x8x64xf32> to vector<8x64xf32>
    %cst = arith.constant dense<0xFF800000> : vector<64xf32>
    %4 = vector.multi_reduction <maximumf>, %1, %cst [0] : vector<8x64xf32> to vector<64xf32>
    %5 = vector.shape_cast %4 : vector<64xf32> to vector<1x64xf32>
    %cst_5 = arith.constant dense<0xFF800000> : vector<64xf32>
    %6 = vector.multi_reduction <maximumf>, %3, %cst_5 [0] : vector<8x64xf32> to vector<64xf32>
    %7 = vector.shape_cast %6 : vector<64xf32> to vector<1x64xf32>
    %cst_6 = arith.constant dense<0.000000e+00> : vector<64xf32>
    %8 = vector.multi_reduction <add>, %1, %cst_6 [0] : vector<8x64xf32> to vector<64xf32>
    %9 = vector.shape_cast %8 : vector<64xf32> to vector<1x64xf32>
    %cst_7 = arith.constant dense<0.000000e+00> : vector<64xf32>
    %10 = vector.multi_reduction <add>, %3, %cst_7 [0] : vector<8x64xf32> to vector<64xf32>
    %11 = vector.shape_cast %10 : vector<64xf32> to vector<1x64xf32>
    %12 = tpu.concatenate %5, %7, %9, %11 in 0 : vector<1x64xf32>, vector<1x64xf32>, vector<1x64xf32>, vector<1x64xf32> -> vector<4x64xf32>
    %13 = tpu.iota {dimensions = array<i32: 0>} : vector<4x64xi32>
    %c2_i32 = arith.constant 2 : i32
    %14 = vector.broadcast %c2_i32 : i32 to vector<4x64xi32>
    %15 = arith.cmpi slt, %13, %14 : vector<4x64xi32>
    %c0_i32 = arith.constant 0 : i32
    %16 = arith.cmpi eq, %arg2, %c0_i32 : i32
    %17 = arith.extui %16 : i1 to i32
    %c0_i32_8 = arith.constant 0 : i32
    %18 = arith.cmpi ne, %17, %c0_i32_8 : i32
    scf.if %18 {
      %c0_13 = arith.constant 0 : index
      %c0_14 = arith.constant 0 : index
      %c0_15 = arith.constant 0 : index
      %25 = vector.load %arg5[%c0_13, %c0_14, %c0_15] : memref<1x4x64xf32, #tpu.memory_space<vmem>>, vector<1x4x64xf32>
      %26 = vector.shape_cast %25 : vector<1x4x64xf32> to vector<4x64xf32>
      %27 = vector.shape_cast %12 : vector<4x64xf32> to vector<1x4x64xf32>
      tpu.vector_store %arg5[%c0_13, %c0_14, %c0_15], %27 {strides = array<i32>} : memref<1x4x64xf32, #tpu.memory_space<vmem>>, vector<1x4x64xf32>,
    } else {
    }
    %c0_i32_9 = arith.constant 0 : i32
    %19 = arith.cmpi sgt, %arg2, %c0_i32_9 : i32
    %20 = arith.extui %19 : i1 to i32
    %c0_i32_10 = arith.constant 0 : i32
    %21 = arith.cmpi ne, %20, %c0_i32_10 : i32
    scf.if %21 {
      %c0_13 = arith.constant 0 : index
      %c0_14 = arith.constant 0 : index
      %c0_15 = arith.constant 0 : index
      %25 = vector.load %arg5[%c0_13, %c0_14, %c0_15] : memref<1x4x64xf32, #tpu.memory_space<vmem>>, vector<1x4x64xf32>
      %26 = vector.shape_cast %25 : vector<1x4x64xf32> to vector<4x64xf32>
      %27 = arith.maximumf %26, %12 : vector<4x64xf32>
      %28 = arith.addf %26, %12 : vector<4x64xf32>
      %29 = arith.select %15, %27, %28 : vector<4x64xi1>, vector<4x64xf32>
      %c0_16 = arith.constant 0 : index
      %c0_17 = arith.constant 0 : index
      %c0_18 = arith.constant 0 : index
      %30 = vector.load %arg5[%c0_16, %c0_17, %c0_18] : memref<1x4x64xf32, #tpu.memory_space<vmem>>, vector<1x4x64xf32>
      %31 = vector.shape_cast %30 : vector<1x4x64xf32> to vector<4x64xf32>
      %32 = vector.shape_cast %29 : vector<4x64xf32> to vector<1x4x64xf32>
      tpu.vector_store %arg5[%c0_16, %c0_17, %c0_18], %32 {strides = array<i32>} : memref<1x4x64xf32, #tpu.memory_space<vmem>>, vector<1x4x64xf32>,
    } else {
    }
    %c0_i32_11 = arith.constant 0 : i32
    %22 = arith.cmpi eq, %arg2, %c0_i32_11 : i32
    %23 = arith.extui %22 : i1 to i32
    %c0_i32_12 = arith.constant 0 : i32
    %24 = arith.cmpi ne, %23, %c0_i32_12 : i32
    scf.if %24 {
      %c0_13 = arith.constant 0 : index
      %c0_14 = arith.constant 0 : index
      %c0_15 = arith.constant 0 : index
      %25 = vector.load %arg5[%c0_13, %c0_14, %c0_15] : memref<1x4x64xf32, #tpu.memory_space<vmem>>, vector<1x4x64xf32>
      %26 = vector.shape_cast %25 : vector<1x4x64xf32> to vector<4x64xf32>
      %cst_16 = arith.constant 1.250000e-01 : f32
      %27 = vector.broadcast %cst_16 : f32 to vector<4x64xf32>
      %28 = arith.mulf %26, %27 : vector<4x64xf32>
      %29 = arith.select %15, %26, %28 : vector<4x64xi1>, vector<4x64xf32>
      %c0_17 = arith.constant 0 : index
      %c0_18 = arith.constant 0 : index
      %c0_19 = arith.constant 0 : index
      %30 = vector.load %arg5[%c0_17, %c0_18, %c0_19] : memref<1x4x64xf32, #tpu.memory_space<vmem>>, vector<1x4x64xf32>
      %31 = vector.shape_cast %30 : vector<1x4x64xf32> to vector<4x64xf32>
      %32 = vector.shape_cast %29 : vector<4x64xf32> to vector<1x4x64xf32>
      tpu.vector_store %arg5[%c0_17, %c0_18, %c0_19], %32 {strides = array<i32>} : memref<1x4x64xf32, #tpu.memory_space<vmem>>, vector<1x4x64xf32>,
    } else {
    }
    return
  }
  func.func @transform_0(%arg0: i32, %arg1: i32, %arg2: i32) -> (i32, i32, i32) {
    %c0_i32 = arith.constant 0 : i32
    return %arg0, %arg2, %arg1 : i32, i32, i32
  }
  func.func @transform_1(%arg0: i32, %arg1: i32, %arg2: i32) -> (i32, i32, i32) {
    %c0_i32 = arith.constant 0 : i32
    return %arg0, %arg2, %arg1 : i32, i32, i32
  }
  func.func @transform_2(%arg0: i32, %arg1: i32, %arg2: i32) -> (i32, i32, i32) {
    %c0_i32 = arith.constant 0 : i32
    %c0_i32_0 = arith.constant 0 : i32
    return %arg0, %c0_i32, %arg1 : i32, i32, i32
  }
}

module attributes {stable_mosaic.version = 11 : i64} {
  func.func @_head_kernel(%arg0: i32, %arg1: memref<4x128xf32, #tpu.memory_space<vmem>>, %arg2: memref<64x4xbf16, #tpu.memory_space<vmem>>, %arg3: memref<64x1xf32, #tpu.memory_space<vmem>>, %arg4: memref<64x64xbf16, #tpu.memory_space<vmem>>, %arg5: memref<64x1xf32, #tpu.memory_space<vmem>>, %arg6: memref<1x64xbf16, #tpu.memory_space<vmem>>, %arg7: memref<1x1xf32, #tpu.memory_space<vmem>>, %arg8: memref<1x128xf32, #tpu.memory_space<vmem>>) attributes {dimension_semantics = [#tpu.dimension_semantics<parallel>], iteration_bounds = array<i64: 1>, scalar_prefetch = 0 : i64, scratch_operands = 0 : i64, tpu.core_type = #tpu.core_type<tc>, window_params = [{transform_indices = @transform_0, window_bounds = array<i64: 4, 128>}, {pipeline_mode = #tpu.pipeline_mode<synchronous>, transform_indices = @transform_1, window_bounds = array<i64: 64, 4>}, {pipeline_mode = #tpu.pipeline_mode<synchronous>, transform_indices = @transform_2, window_bounds = array<i64: 64, 1>}, {pipeline_mode = #tpu.pipeline_mode<synchronous>, transform_indices = @transform_3, window_bounds = array<i64: 64, 64>}, {pipeline_mode = #tpu.pipeline_mode<synchronous>, transform_indices = @transform_4, window_bounds = array<i64: 64, 1>}, {pipeline_mode = #tpu.pipeline_mode<synchronous>, transform_indices = @transform_5, window_bounds = array<i64: 1, 64>}, {pipeline_mode = #tpu.pipeline_mode<synchronous>, transform_indices = @transform_6, window_bounds = array<i64: 1, 1>}, {transform_indices = @transform_7, window_bounds = array<i64: 1, 128>}]} {
    %c0 = arith.constant 0 : index
    %c0_0 = arith.constant 0 : index
    %0 = vector.load %arg1[%c0, %c0_0] : memref<4x128xf32, #tpu.memory_space<vmem>>, vector<4x128xf32>
    %cst = arith.constant dense<0xFF800000> : vector<128xf32>
    %1 = vector.multi_reduction <maximumf>, %0, %cst [0] : vector<4x128xf32> to vector<128xf32>
    %2 = vector.shape_cast %1 : vector<128xf32> to vector<1x128xf32>
    %3 = vector.broadcast %2 : vector<1x128xf32> to vector<4x128xf32>
    %4 = arith.subf %0, %3 : vector<4x128xf32>
    %5 = math.exp %4 : vector<4x128xf32>
    %cst_1 = arith.constant dense<0.000000e+00> : vector<128xf32>
    %6 = vector.multi_reduction <add>, %5, %cst_1 [0] : vector<4x128xf32> to vector<128xf32>
    %7 = vector.shape_cast %6 : vector<128xf32> to vector<1x128xf32>
    %8 = tpu.reciprocal %7 {approx = true} : vector<1x128xf32> -> vector<1x128xf32>
    %9 = vector.broadcast %8 : vector<1x128xf32> to vector<4x128xf32>
    %10 = arith.mulf %5, %9 : vector<4x128xf32>
    %c0_2 = arith.constant 0 : index
    %c0_3 = arith.constant 0 : index
    %11 = vector.load %arg2[%c0_2, %c0_3] : memref<64x4xbf16, #tpu.memory_space<vmem>>, vector<64x4xbf16>
    %12 = arith.truncf %10 : vector<4x128xf32> to vector<4x128xbf16>
    %cst_4 = arith.constant dense<0.000000e+00> : vector<64x128xf32>
    %13 = tpu.matmul %11, %12, %cst_4 {dimension_numbers = #tpu.dot_dimension_numbers<[1], [0], [0], [1], [0, 0, 1, 1], [], []>} : vector<64x4xbf16>, vector<4x128xbf16>, vector<64x128xf32> -> vector<64x128xf32>
    %c0_5 = arith.constant 0 : index
    %c0_6 = arith.constant 0 : index
    %14 = vector.load %arg3[%c0_5, %c0_6] : memref<64x1xf32, #tpu.memory_space<vmem>>, vector<64x1xf32>
    %15 = vector.broadcast %14 : vector<64x1xf32> to vector<64x128xf32>
    %16 = arith.addf %13, %15 : vector<64x128xf32>
    %cst_7 = arith.constant 0.000000e+00 : f32
    %17 = vector.broadcast %cst_7 : f32 to vector<64x128xf32>
    %18 = arith.maximumf %16, %17 : vector<64x128xf32>
    %c0_8 = arith.constant 0 : index
    %c0_9 = arith.constant 0 : index
    %19 = vector.load %arg4[%c0_8, %c0_9] : memref<64x64xbf16, #tpu.memory_space<vmem>>, vector<64x64xbf16>
    %20 = arith.truncf %18 : vector<64x128xf32> to vector<64x128xbf16>
    %cst_10 = arith.constant dense<0.000000e+00> : vector<64x128xf32>
    %21 = tpu.matmul %19, %20, %cst_10 {dimension_numbers = #tpu.dot_dimension_numbers<[1], [0], [0], [1], [0, 0, 1, 1], [], []>} : vector<64x64xbf16>, vector<64x128xbf16>, vector<64x128xf32> -> vector<64x128xf32>
    %c0_11 = arith.constant 0 : index
    %c0_12 = arith.constant 0 : index
    %22 = vector.load %arg5[%c0_11, %c0_12] : memref<64x1xf32, #tpu.memory_space<vmem>>, vector<64x1xf32>
    %23 = vector.broadcast %22 : vector<64x1xf32> to vector<64x128xf32>
    %24 = arith.addf %21, %23 : vector<64x128xf32>
    %cst_13 = arith.constant 0.000000e+00 : f32
    %25 = vector.broadcast %cst_13 : f32 to vector<64x128xf32>
    %26 = arith.maximumf %24, %25 : vector<64x128xf32>
    %c0_14 = arith.constant 0 : index
    %c0_15 = arith.constant 0 : index
    %27 = vector.load %arg6[%c0_14, %c0_15] : memref<1x64xbf16, #tpu.memory_space<vmem>>, vector<1x64xbf16>
    %28 = arith.truncf %26 : vector<64x128xf32> to vector<64x128xbf16>
    %cst_16 = arith.constant dense<0.000000e+00> : vector<1x128xf32>
    %29 = tpu.matmul %27, %28, %cst_16 {dimension_numbers = #tpu.dot_dimension_numbers<[1], [0], [0], [1], [0, 0, 1, 1], [], []>} : vector<1x64xbf16>, vector<64x128xbf16>, vector<1x128xf32> -> vector<1x128xf32>
    %c0_17 = arith.constant 0 : index
    %c0_18 = arith.constant 0 : index
    %30 = vector.load %arg7[%c0_17, %c0_18] : memref<1x1xf32, #tpu.memory_space<vmem>>, vector<1x1xf32>
    %31 = vector.broadcast %30 : vector<1x1xf32> to vector<1x128xf32>
    %32 = arith.addf %29, %31 : vector<1x128xf32>
    %cst_19 = arith.constant 0.000000e+00 : f32
    %33 = vector.broadcast %cst_19 : f32 to vector<1x128xf32>
    %34 = arith.maximumf %32, %33 : vector<1x128xf32>
    %c0_20 = arith.constant 0 : index
    %c0_21 = arith.constant 0 : index
    %35 = vector.load %arg8[%c0_20, %c0_21] : memref<1x128xf32, #tpu.memory_space<vmem>>, vector<1x128xf32>
    tpu.vector_store %arg8[%c0_20, %c0_21], %34 {strides = array<i32>} : memref<1x128xf32, #tpu.memory_space<vmem>>, vector<1x128xf32>,
    return
  }
  func.func @transform_0(%arg0: i32) -> (i32, i32) {
    %c0_i32 = arith.constant 0 : i32
    %c0_i32_0 = arith.constant 0 : i32
    return %c0_i32, %arg0 : i32, i32
  }
  func.func @transform_1(%arg0: i32) -> (i32, i32) {
    %c0_i32 = arith.constant 0 : i32
    %c0_i32_0 = arith.constant 0 : i32
    %c0_i32_1 = arith.constant 0 : i32
    return %c0_i32, %c0_i32_0 : i32, i32
  }
  func.func @transform_2(%arg0: i32) -> (i32, i32) {
    %c0_i32 = arith.constant 0 : i32
    %c0_i32_0 = arith.constant 0 : i32
    %c0_i32_1 = arith.constant 0 : i32
    return %c0_i32, %c0_i32_0 : i32, i32
  }
  func.func @transform_3(%arg0: i32) -> (i32, i32) {
    %c0_i32 = arith.constant 0 : i32
    %c0_i32_0 = arith.constant 0 : i32
    %c0_i32_1 = arith.constant 0 : i32
    return %c0_i32, %c0_i32_0 : i32, i32
  }
  func.func @transform_4(%arg0: i32) -> (i32, i32) {
    %c0_i32 = arith.constant 0 : i32
    %c0_i32_0 = arith.constant 0 : i32
    %c0_i32_1 = arith.constant 0 : i32
    return %c0_i32, %c0_i32_0 : i32, i32
  }
  func.func @transform_5(%arg0: i32) -> (i32, i32) {
    %c0_i32 = arith.constant 0 : i32
    %c0_i32_0 = arith.constant 0 : i32
    %c0_i32_1 = arith.constant 0 : i32
    return %c0_i32, %c0_i32_0 : i32, i32
  }
  func.func @transform_6(%arg0: i32) -> (i32, i32) {
    %c0_i32 = arith.constant 0 : i32
    %c0_i32_0 = arith.constant 0 : i32
    %c0_i32_1 = arith.constant 0 : i32
    return %c0_i32, %c0_i32_0 : i32, i32
  }
  func.func @transform_7(%arg0: i32) -> (i32, i32) {
    %c0_i32 = arith.constant 0 : i32
    %c0_i32_0 = arith.constant 0 : i32
    return %c0_i32, %arg0 : i32, i32
  }
}

</mosaic_0001>

<llo_original>
// kernel: mlp_forward.2
$region0: #{mlp_forward.2}
  #allocation0 [shape = 'u32[]', space=smem, size = 0x4, offset = 0x4, fixed_abs, tag = 'smem constant byte address 0x4 - core index']
  #allocation1 [shape = 'u32[144,128]{1,0:T(1,128)}', space=vmem, size = 0x12000, scoped, tag = 'internal scratch']
  %s0 = inlined_call_operand.vmem [shape: f32[2,8,64], index: 0, kind: input, shape index: {}]
  %s1 = inlined_call_operand.vmem [shape: f32[2,8,64], index: 1, kind: input, shape index: {}]
  %s2 = inlined_call_operand.vmem [shape: f32[2,4,64], index: 2, kind: output, shape index: {}]
  %s3 = sld [smem:[#allocation0]]
  $region53: #{mlp_forward.2} parent=0
    _
  %s5 = ssub.s32 1, %s3
  %s6 = scalar_select 0, %s5, %s3
  loop: start=0, step=1, limit=4
  $region2: #{mlp_forward.2} parent=0 // loop_pre_header
    _
  $region3: #{mlp_forward.2} parent=0 // loop_header
    %s8 = sphi 0, %s12
    %p9 = scmp.ge.s32.totalorder %s8, 4
    %s15 = sphi 0, %s34
    %s16 = sphi 0, %s30
    %s17 = sphi 0, %s26
    %s18 = sphi 0, %s15
    %s19 = sphi 0, %s16
    %s20 = sphi 0, %s17
    %s21 = sphi 0, %s18
    %s22 = sphi 0, %s19
    %s23 = sphi 0, %s20
    %s41 = sphi 0, %s43
    %s44 = sphi 0, %s41
    %s45 = sphi 0, %s44
    %s61 = sphi 0, %s45
    %s71 = sphi 0, %s73
    %s74 = sphi 0, %s71
    %s75 = sphi 0, %s74
    %s91 = sphi 0, %s75
    %s99 = sphi 0, %s101
    %s102 = sphi 0, %s99
    %s103 = sphi 0, %s102
    %s119 = sphi 0, %s103
  $region4: #{mlp_forward.2} parent=0 // loop_header_branch
    %11 = sbr.rel (%p9) target = $region8
  $region5: #{mlp_forward.2} parent=0 // loop_body
    %s13 = ssub.s32 %s8, 1
    %s14 = ssub.s32 %s8, 2
    %s24 = sadd.s32 1, %s17
    %p25 = scmp.ge.s32.totalorder %s24, 1
    %s26 = scalar_select %p25, 0, %s24
    %s27 = sadd.s32 1, %s16
    %s28 = scalar_select %p25, %s27, %s16
    %p29 = scmp.ge.s32.totalorder %s28, 1
    %s30 = scalar_select %p29, 0, %s28
    %s31 = sadd.s32 1, %s15
    %s32 = scalar_select %p29, %s31, %s15
    %p33 = scmp.ge.s32.totalorder %s32, 2
    %s34 = scalar_select %p33, 0, %s32
    %s35 = ssub.s32 %s15, %s34
    %s36 = ssub.s32 %s17, %s26
    %s37 = sor.u32 %s35, %s36
    %s38 = ssub.s32 %s16, %s30
    %s39 = sor.u32 %s37, %s38
    %p40 = scmp.eq.s32.totalorder %s39, 0
    %s42 = sadd.s32 %s41, 1
    %s43 = scalar_select %p40, %s41, %s42
    %p46 = pneg %p40
    %p47 = scmp.eq.s32.totalorder %s8, 1
    %p48 = por %p46, %p47
    %p49 = scmp.ne.s32.totalorder %s41, %s44
    %p50 = scmp.eq.s32.totalorder %s8, 0
    %p51 = por %p49, %p50
    %p52 = scmp.ne.s32.totalorder %s41, %s44
    %p53 = scmp.eq.s32.totalorder %s13, 1
    %p54 = por %p52, %p53
    %p55 = scmp.ne.s32.totalorder %s44, %s45
    %p56 = scmp.eq.s32.totalorder %s13, 0
    %p57 = por %p55, %p56
    %p58 = scmp.ne.s32.totalorder %s44, %s45
    %p59 = scmp.eq.s32.totalorder %s14, 1
    %p60 = por %p58, %p59
    %p62 = scmp.ne.s32.totalorder %s45, %s61
    %p63 = scmp.eq.s32.totalorder %s14, 0
    %p64 = por %p62, %p63
    %s65 = ssub.s32 %s15, %s34
    %s66 = ssub.s32 %s17, %s26
    %s67 = sor.u32 %s65, %s66
    %s68 = ssub.s32 %s16, %s30
    %s69 = sor.u32 %s67, %s68
    %p70 = scmp.eq.s32.totalorder %s69, 0
    %s72 = sadd.s32 %s71, 1
    %s73 = scalar_select %p70, %s71, %s72
    %p76 = pneg %p70
    %p77 = scmp.eq.s32.totalorder %s8, 1
    %p78 = por %p76, %p77
    %p79 = scmp.ne.s32.totalorder %s71, %s74
    %p80 = scmp.eq.s32.totalorder %s8, 0
    %p81 = por %p79, %p80
    %p82 = scmp.ne.s32.totalorder %s71, %s74
    %p83 = scmp.eq.s32.totalorder %s13, 1
    %p84 = por %p82, %p83
    %p85 = scmp.ne.s32.totalorder %s74, %s75
    %p86 = scmp.eq.s32.totalorder %s13, 0
    %p87 = por %p85, %p86
    %p88 = scmp.ne.s32.totalorder %s74, %s75
    %p89 = scmp.eq.s32.totalorder %s14, 1
    %p90 = por %p88, %p89
    %p92 = scmp.ne.s32.totalorder %s75, %s91
    %p93 = scmp.eq.s32.totalorder %s14, 0
    %p94 = por %p92, %p93
    %s95 = ssub.s32 %s15, %s34
    %s96 = ssub.s32 %s16, %s30
    %s97 = sor.u32 %s95, %s96
    %p98 = scmp.eq.s32.totalorder %s97, 0
    %s100 = sadd.s32 %s99, 1
    %s101 = scalar_select %p98, %s99, %s100
    %p104 = pneg %p98
    %p105 = scmp.eq.s32.totalorder %s8, 1
    %p106 = por %p104, %p105
    %p107 = scmp.ne.s32.totalorder %s99, %s102
    %p108 = scmp.eq.s32.totalorder %s8, 0
    %p109 = por %p107, %p108
    %p110 = scmp.ne.s32.totalorder %s99, %s102
    %p111 = scmp.eq.s32.totalorder %s13, 1
    %p112 = por %p110, %p111
    %p113 = scmp.ne.s32.totalorder %s102, %s103
    %p114 = scmp.eq.s32.totalorder %s13, 0
    %p115 = por %p113, %p114
    %p116 = scmp.ne.s32.totalorder %s102, %s103
    %p117 = scmp.eq.s32.totalorder %s14, 1
    %p118 = por %p116, %p117
    %p120 = scmp.ne.s32.totalorder %s103, %s119
    %p121 = scmp.eq.s32.totalorder %s14, 0
    %p122 = por %p120, %p121
    %p123 = scmp.le.s32.totalorder 1, %s8
    %p124 = scmp.lt.s32.totalorder %s8, 3
    %p125 = pnand %p123, %p124
    %p126 = pneg %p125
    // Predicated region
    $region9: #{mlp_forward.2} parent=5 // pred_check
      _
    $region10: #{mlp_forward.2} parent=5 // pred_check_branch
      %128 = sbr.rel (%p125) target = $region12
    $region11: #{mlp_forward.2} parent=5 // pred_region
      %s129 = ssub.s32 %s8, 1
    $region12: #{mlp_forward.2} parent=5 // pred_fallthru
      _
    %p130 = scmp.lt.s32.totalorder %s8, 2
    // Predicated region
    $region13: #{mlp_forward.2} parent=5 // pred_check
      %p131 = pneg %p130
    $region14: #{mlp_forward.2} parent=5 // pred_check_branch
      %133 = sbr.rel (%p131) target = $region16
    $region15: #{mlp_forward.2} parent=5 // pred_region
      // Predicated region
      $region17: #{mlp_forward.2} parent=15 // pred_check
        %p134 = pneg %p51
      $region18: #{mlp_forward.2} parent=15 // pred_check_branch
        %136 = sbr.rel (%p134) target = $region20
      $region19: #{mlp_forward.2} parent=15 // pred_region
        %p137 = scmp.lt.s32.totalorder %s15, 1
        %s138 = scalar_select %p137, %s15, 1
        %p139 = scmp.lt.s32.totalorder %s17, 0
        %s140 = scalar_select %p139, %s17, 0
        %p141 = scmp.lt.s32.totalorder %s16, 0
        %s142 = scalar_select %p141, %s16, 0
        %s143 = sadd.s32 %s142, %s140
        %s144 = sadd.s32 %s143, %s138
        %s145 = smul.addr %s144, 8
        %s146 = scalar_lea.vmem %s0, %s145
      $region20: #{mlp_forward.2} parent=15 // pred_fallthru
        _
      // Predicated region
      $region21: #{mlp_forward.2} parent=15 // pred_check
        %p147 = pneg %p81
      $region22: #{mlp_forward.2} parent=15 // pred_check_branch
        %149 = sbr.rel (%p147) target = $region24
      $region23: #{mlp_forward.2} parent=15 // pred_region
        %p150 = scmp.lt.s32.totalorder %s15, 1
        %s151 = scalar_select %p150, %s15, 1
        %p152 = scmp.lt.s32.totalorder %s17, 0
        %s153 = scalar_select %p152, %s17, 0
        %p154 = scmp.lt.s32.totalorder %s16, 0
        %s155 = scalar_select %p154, %s16, 0
        %s156 = sadd.s32 %s155, %s153
        %s157 = sadd.s32 %s156, %s151
        %s158 = smul.addr %s157, 8
        %s159 = scalar_lea.vmem %s1, %s158
      $region24: #{mlp_forward.2} parent=15 // pred_fallthru
        _
    $region16: #{mlp_forward.2} parent=5 // pred_fallthru
      _
    %p160 = scmp.le.s32.totalorder 1, %s8
    %p161 = scmp.lt.s32.totalorder %s8, 3
    %p162 = pnand %p160, %p161
    %p163 = pneg %p162
    // Predicated region
    $region25: #{mlp_forward.2} parent=5 // pred_check
      _
    $region26: #{mlp_forward.2} parent=5 // pred_check_branch
      %165 = sbr.rel (%p162) target = $region28
    $region27: #{mlp_forward.2} parent=5 // pred_region
      %s166 = ssub.s32 %s8, 1
      %p167 = scmp.lt.s32.totalorder %s18, 1
      %s168 = scalar_select %p167, %s18, 1
      %p169 = scmp.lt.s32.totalorder %s20, 0
      %s170 = scalar_select %p169, %s20, 0
      %p171 = scmp.lt.s32.totalorder %s19, 0
      %s172 = scalar_select %p171, %s19, 0
      %s173 = sadd.s32 %s172, %s170
      %s174 = sadd.s32 %s173, %s168
      %s175 = smul.addr %s174, 8
      %s176 = scalar_lea.vmem %s0, %s175
      %p177 = pneg %p57
      %p178 = pneg %p54
      %p179 = scmp.lt.s32.totalorder %s18, 1
      %s180 = scalar_select %p179, %s18, 1
      %p181 = scmp.lt.s32.totalorder %s20, 0
      %s182 = scalar_select %p181, %s20, 0
      %p183 = scmp.lt.s32.totalorder %s19, 0
      %s184 = scalar_select %p183, %s19, 0
      %s185 = sadd.s32 %s184, %s182
      %s186 = sadd.s32 %s185, %s180
      %s187 = smul.addr %s186, 8
      %s188 = scalar_lea.vmem %s1, %s187
      %p189 = pneg %p87
      %p190 = pneg %p84
      %p191 = pneg %p115
      %p192 = pneg %p112
      %p193 = scmp.lt.s32.totalorder %s18, 1
      %s194 = scalar_select %p193, %s18, 1
      %p195 = scmp.lt.s32.totalorder %s19, 0
      %s196 = scalar_select %p195, %s19, 0
      %s197 = sadd.s32 %s196, %s194
      %s198 = smul.addr %s197, 4
      %s199 = scalar_lea.vmem %s2, %s198
      %p200 = scmp.lt.s32.totalorder %s18, 1
      %s201 = scalar_select %p200, %s18, 1
      %p202 = scmp.lt.s32.totalorder %s20, 0
      %s203 = scalar_select %p202, %s20, 0
      %p204 = scmp.lt.s32.totalorder %s19, 0
      %s205 = scalar_select %p204, %s19, 0
      %s206 = sadd.s32 %s205, %s203
      %s207 = sadd.s32 %s206, %s201
      %s208 = smul.addr %s207, 8
      %s209 = scalar_lea.vmem %s0, %s208
      %p210 = scmp.lt.s32.totalorder %s18, 1
      %s211 = scalar_select %p210, %s18, 1
      %p212 = scmp.lt.s32.totalorder %s20, 0
      %s213 = scalar_select %p212, %s20, 0
      %p214 = scmp.lt.s32.totalorder %s19, 0
      %s215 = scalar_select %p214, %s19, 0
      %s216 = sadd.s32 %s215, %s213
      %s217 = sadd.s32 %s216, %s211
      %s218 = smul.addr %s217, 8
      %s219 = scalar_lea.vmem %s1, %s218
      %p220 = scmp.lt.s32.totalorder %s18, 1
      %s221 = scalar_select %p220, %s18, 1
      %p222 = scmp.lt.s32.totalorder %s19, 0
      %s223 = scalar_select %p222, %s19, 0
      %s224 = sadd.s32 %s223, %s221
      %s225 = smul.addr %s224, 4
      %s226 = scalar_lea.vmem %s2, %s225
      %v227 = vld [vmem:[%s209] sm:$0xff]
      %v228 = vld [vmem:[%s219] sm:$0xff]
      %vm229 = vcmask 523264
      %v230 = vsel %vm229, %v227, -inf
      %v231 = vrot.slane %v230, 4
      %v232 = vmax.f32 %v230, %v231
      %v233 = vrot.slane %v232, 2
      %v234 = vmax.f32 %v232, %v233
      %v235 = vrot.slane %v234, 1
      %v236 = vmax.f32 %v234, %v235
      %v237 = vsel %vm229, %v228, -inf
      %v238 = vrot.slane %v237, 4
      %v239 = vmax.f32 %v237, %v238
      %v240 = vrot.slane %v239, 2
      %v241 = vmax.f32 %v239, %v240
      %v242 = vrot.slane %v241, 1
      %v243 = vmax.f32 %v241, %v242
      %v244 = vsel %vm229, %v227, 0.0
      %v245 = vrot.slane %v244, 4
      %v246 = vadd.f32 %v244, %v245
      %v247 = vrot.slane %v246, 2
      %v248 = vadd.f32 %v246, %v247
      %v249 = vrot.slane %v248, 1
      %v250 = vadd.f32 %v248, %v249
      %v251 = vsel %vm229, %v228, 0.0
      %v252 = vrot.slane %v251, 4
      %v253 = vadd.f32 %v251, %v252
      %v254 = vrot.slane %v253, 2
      %v255 = vadd.f32 %v253, %v254
      %v256 = vrot.slane %v255, 1
      %v257 = vadd.f32 %v255, %v256
      %vm258 = vcmask 1040384
      %v259 = vsel %vm258, %v236, %v243
      %vm260 = vcmask 1041408
      %v261 = vsel %vm260, %v259, %v250
      %vm262 = vcmask 1042432
      %v263 = vsel %vm262, %v261, %v257
      %v264 = vlaneseq
      %v265 = vshrl.u32 %v264, 7
      %vm266 = vcmp.lt.s32.totalorder %v265, 2
      %p267 = scmp.eq.s32.totalorder %s20, 0
      // Predicated region
      $region29: #{mlp_forward.2} parent=27 // pred_check
        %p268 = pneg %p267
      $region30: #{mlp_forward.2} parent=27 // pred_check_branch
        %270 = sbr.rel (%p268) target = $region32
      $region31: #{mlp_forward.2} parent=27 // pred_region
        %vm271 = vcmask 519168
        %272 = vst.msk [vmem:[%s226] sm:$0xf] %vm271, %v263
      $region32: #{mlp_forward.2} parent=27 // pred_fallthru
        _
      %p273 = scmp.gt.s32.totalorder %s20, 0
      // Predicated region
      $region33: #{mlp_forward.2} parent=27 // pred_check
        %p274 = pneg %p273
      $region34: #{mlp_forward.2} parent=27 // pred_check_branch
        %276 = sbr.rel (%p274) target = $region36
      $region35: #{mlp_forward.2} parent=27 // pred_region
        %v277 = vld [vmem:[%s226] sm:$0xf]
        %v278 = vmax.f32 %v277, %v263
        %v279 = vadd.f32 %v277, %v263
        %v280 = vsel %vm266, %v278, %v279
        %vm281 = vcmask 519168
        %282 = vst.msk [vmem:[%s226] sm:$0xf] %vm281, %v280
      $region36: #{mlp_forward.2} parent=27 // pred_fallthru
        _
      // Predicated region
      $region37: #{mlp_forward.2} parent=27 // pred_check
        %p283 = pneg %p267
      $region38: #{mlp_forward.2} parent=27 // pred_check_branch
        %285 = sbr.rel (%p283) target = $region40
      $region39: #{mlp_forward.2} parent=27 // pred_region
        %v286 = vld [vmem:[%s226] sm:$0xf]
        %v287 = vmul.f32 %v286, 0.125
        %v288 = vsel %vm266, %v286, %v287
        %vm289 = vcmask 519168
        %290 = vst.msk [vmem:[%s226] sm:$0xf] %vm289, %v288
      $region40: #{mlp_forward.2} parent=27 // pred_fallthru
        _
      %p291 = scmp.lt.s32.totalorder %s18, 1
      %s292 = scalar_select %p291, %s18, 1
      %p293 = scmp.lt.s32.totalorder %s19, 0
      %s294 = scalar_select %p293, %s19, 0
      %s295 = sadd.s32 %s294, %s292
      %s296 = smul.addr %s295, 4
      %s297 = scalar_lea.vmem %s2, %s296
      // Predicated region
      $region41: #{mlp_forward.2} parent=27 // pred_check
        %p298 = pneg %p112
      $region42: #{mlp_forward.2} parent=27 // pred_check_branch
        %300 = sbr.rel (%p298) target = $region44
      $region43: #{mlp_forward.2} parent=27 // pred_region
        _
      $region44: #{mlp_forward.2} parent=27 // pred_fallthru
        _
    $region28: #{mlp_forward.2} parent=5 // pred_fallthru
      _
    %p301 = scmp.le.s32.totalorder 2, %s8
    // Predicated region
    $region45: #{mlp_forward.2} parent=5 // pred_check
      %p302 = pneg %p301
    $region46: #{mlp_forward.2} parent=5 // pred_check_branch
      %304 = sbr.rel (%p302) target = $region48
    $region47: #{mlp_forward.2} parent=5 // pred_region
      %s305 = ssub.s32 %s8, 2
      // Predicated region
      $region49: #{mlp_forward.2} parent=47 // pred_check
        %p306 = pneg %p118
      $region50: #{mlp_forward.2} parent=47 // pred_check_branch
        %308 = sbr.rel (%p306) target = $region52
      $region51: #{mlp_forward.2} parent=47 // pred_region
        %p309 = scmp.lt.s32.totalorder %s21, 1
        %s310 = scalar_select %p309, %s21, 1
        %p311 = scmp.lt.s32.totalorder %s22, 0
        %s312 = scalar_select %p311, %s22, 0
        %s313 = sadd.s32 %s312, %s310
        %s314 = smul.addr %s313, 4
        %s315 = scalar_lea.vmem %s2, %s314
      $region52: #{mlp_forward.2} parent=47 // pred_fallthru
        _
    $region48: #{mlp_forward.2} parent=5 // pred_fallthru
      _
  $region6: #{mlp_forward.2} parent=0 // loop_footer
    %s12 = sadd.s32 1, %s8
  $region7: #{mlp_forward.2} parent=0 // loop_footer_branch
    %7 = sbr.rel target = $region3
  $region8: #{mlp_forward.2} parent=0 // loop_exit
    _

// kernel: mlp_forward.3
$region0: #{mlp_forward.3}
  #allocation0 [shape = 'u32[]', space=smem, size = 0x4, offset = 0x4, fixed_abs, tag = 'smem constant byte address 0x4 - core index']
  #allocation1 [shape = 'u32[144,128]{1,0:T(1,128)}', space=vmem, size = 0x12000, scoped, tag = 'internal scratch']
  #allocation2 [shape = 'f32[1,1]{1,0:T(1,128)S(1)}', space=vmem, size = 0x200, scoped, tag = 'scoped memory for mlp_forward.3']
  %s0 = inlined_call_operand.vmem [shape: f32[4,128], index: 0, kind: input, shape index: {}]
  %s1 = inlined_call_operand.vmem [shape: bf16[64,4], index: 1, kind: input, shape index: {}]
  %s2 = inlined_call_operand.vmem [shape: f32[64,1], index: 2, kind: input, shape index: {}]
  %s3 = inlined_call_operand.vmem [shape: bf16[64,64], index: 3, kind: input, shape index: {}]
  %s4 = inlined_call_operand.vmem [shape: f32[64,1], index: 4, kind: input, shape index: {}]
  %s5 = inlined_call_operand.vmem [shape: bf16[1,64], index: 5, kind: input, shape index: {}]
  %s6 = inlined_call_operand.<no memory space> [shape: f32[1,1], index: 6, kind: input, shape index: {}]
  %s7 = inlined_call_operand.vmem [shape: f32[1,128], index: 7, kind: output, shape index: {}]
  %s8 = sld [smem:[#allocation0]]
  $region38: #{mlp_forward.3} parent=0
    _
  %s10 = ssub.s32 1, %s8
  %s11 = scalar_select 0, %s10, %s8
  %v12 = vstv %s6
  %13 = vst [vmem:[#allocation2] sm:$0x1] %v12
  // Predicated region
  $region2: #{mlp_forward.3} parent=0 // pred_check
    _
  $region3: #{mlp_forward.3} parent=0 // pred_check_branch
    %15 = sbr.rel (0) target = $region5
  $region4: #{mlp_forward.3} parent=0 // pred_region
    _
  $region5: #{mlp_forward.3} parent=0 // pred_fallthru
    _
  // Predicated region
  $region6: #{mlp_forward.3} parent=0 // pred_check
    _
  $region7: #{mlp_forward.3} parent=0 // pred_check_branch
    %17 = sbr.rel (0) target = $region9
  $region8: #{mlp_forward.3} parent=0 // pred_region
    _
  $region9: #{mlp_forward.3} parent=0 // pred_fallthru
    _
  // Predicated region
  $region10: #{mlp_forward.3} parent=0 // pred_check
    _
  $region11: #{mlp_forward.3} parent=0 // pred_check_branch
    %19 = sbr.rel (0) target = $region13
  $region12: #{mlp_forward.3} parent=0 // pred_region
    _
  $region13: #{mlp_forward.3} parent=0 // pred_fallthru
    _
  // Predicated region
  $region14: #{mlp_forward.3} parent=0 // pred_check
    _
  $region15: #{mlp_forward.3} parent=0 // pred_check_branch
    %21 = sbr.rel (0) target = $region17
  $region16: #{mlp_forward.3} parent=0 // pred_region
    _
  $region17: #{mlp_forward.3} parent=0 // pred_fallthru
    _
  // Predicated region
  $region18: #{mlp_forward.3} parent=0 // pred_check
    _
  $region19: #{mlp_forward.3} parent=0 // pred_check_branch
    %23 = sbr.rel (0) target = $region21
  $region20: #{mlp_forward.3} parent=0 // pred_region
    _
  $region21: #{mlp_forward.3} parent=0 // pred_fallthru
    _
  // Predicated region
  $region22: #{mlp_forward.3} parent=0 // pred_check
    _
  $region23: #{mlp_forward.3} parent=0 // pred_check_branch
    %25 = sbr.rel (0) target = $region25
  $region24: #{mlp_forward.3} parent=0 // pred_region
    _
  $region25: #{mlp_forward.3} parent=0 // pred_fallthru
    _
  // Predicated region
  $region26: #{mlp_forward.3} parent=0 // pred_check
    _
  $region27: #{mlp_forward.3} parent=0 // pred_check_branch
    %27 = sbr.rel (0) target = $region29
  $region28: #{mlp_forward.3} parent=0 // pred_region
    _
  $region29: #{mlp_forward.3} parent=0 // pred_fallthru
    _
  %v29 = vld [vmem:[%s0] sm:$0xf]
  %vm30 = vcmask 1043456
  %v31 = vsel %vm30, %v29, -inf
  %v32 = vrot.slane %v31, 4
  %v33 = vmax.f32 %v31, %v32
  %v34 = vrot.slane %v33, 2
  %v35 = vmax.f32 %v33, %v34
  %v36 = vrot.slane %v35, 1
  %v37 = vmax.f32 %v35, %v36
  %v38 = vsub.f32 %v29, %v37
  %v39 = vmul.f32 %v38, 1.442695
  %v40 = vpow.pop %v39
  %v41 = vsel %vm30, %v40, 0.0
  %v42 = vrot.slane %v41, 4
  %v43 = vadd.f32 %v41, %v42
  %v44 = vrot.slane %v43, 2
  %v45 = vadd.f32 %v43, %v44
  %v46 = vrot.slane %v45, 1
  %v47 = vadd.f32 %v45, %v46
  %v48 = vrcp.pop %v47
  %v49 = vmul.f32 %v40, %v48
  %v50 = vld [vmem:[%s1] sm:$0xf]
  %v51 = vld [vmem:[%s1 + $0x4] sm:$0xf]
  %v52 = vld [vmem:[%s1 + $0x8] sm:$0xf]
  %v53 = vld [vmem:[%s1 + $0xc] sm:$0xf]
  %v54 = vld [vmem:[%s1 + $0x10] sm:$0xf]
  %v55 = vld [vmem:[%s1 + $0x14] sm:$0xf]
  %v56 = vld [vmem:[%s1 + $0x18] sm:$0xf]
  %v57 = vld [vmem:[%s1 + $0x1c] sm:$0xf]
  %v58 = vpack.c.bf16 %v49, %v49
  %v59 = vld [vmem:[%s2] sm:$0xff]
  %v60 = vld [vmem:[%s2 + $0x8] sm:$0xff]
  %v61 = vld [vmem:[%s2 + $0x10] sm:$0xff]
  %v62 = vld [vmem:[%s2 + $0x18] sm:$0xff]
  %v63 = vld [vmem:[%s2 + $0x20] sm:$0xff]
  %v64 = vld [vmem:[%s2 + $0x28] sm:$0xff]
  %v65 = vld [vmem:[%s2 + $0x30] sm:$0xff]
  %v66 = vld [vmem:[%s2 + $0x38] sm:$0xff]
  %68 = vset.pattern.permute.xlu0 0
  %69 = vperm.xlu0 %68, %v59
  %v70 = vpop.permute.xlu0 %69
  %73 = vset.pattern.permute.xlu0 0
  %74 = vperm.xlu0 %73, %v60
  %v75 = vpop.permute.xlu0 %74
  %78 = vset.pattern.permute.xlu0 0
  %79 = vperm.xlu0 %78, %v61
  %v80 = vpop.permute.xlu0 %79
  %83 = vset.pattern.permute.xlu0 0
  %84 = vperm.xlu0 %83, %v62
  %v85 = vpop.permute.xlu0 %84
  %88 = vset.pattern.permute.xlu0 0
  %89 = vperm.xlu0 %88, %v63
  %v90 = vpop.permute.xlu0 %89
  %93 = vset.pattern.permute.xlu0 0
  %94 = vperm.xlu0 %93, %v64
  %v95 = vpop.permute.xlu0 %94
  %98 = vset.pattern.permute.xlu0 0
  %99 = vperm.xlu0 %98, %v65
  %v100 = vpop.permute.xlu0 %99
  %103 = vset.pattern.permute.xlu0 0
  %104 = vperm.xlu0 %103, %v66
  %v105 = vpop.permute.xlu0 %104
  %v115 = vunpack.c.l.b16 %v50
  %v116 = vunpack.c.l.b16 %v51
  %v117 = vunpack.c.l.b16 %v52
  %v118 = vunpack.c.l.b16 %v53
  %v119 = vunpack.c.l.b16 %v54
  %v120 = vunpack.c.l.b16 %v55
  %v121 = vunpack.c.l.b16 %v56
  %v122 = vunpack.c.l.b16 %v57
  %v123 = vpack.c.b16 %v116, %v115
  %v124 = vpack.c.b16 %v118, %v117
  %v125 = vpack.c.b16 %v120, %v119
  %v126 = vpack.c.b16 %v122, %v121
  %vm127 = vcmask 31744
  %v129 = vsel %vm127, %v123, 0
  %v132 = vsel %vm127, %v124, 0
  %v135 = vsel %vm127, %v125, 0
  %v138 = vsel %vm127, %v126, 0
  %vm140 = vcmask 1041408
  %v142 = vsel %vm140, %v58, 0
  %144 = vmatprep.subr.bf16.mxu0 0
  %145 = vmatpush1.bf16.msra.mxu0 0
  %146 = vmatprep.subr.bf16.mxu0 0
  %147 = vmatpush1.bf16.msra.mxu0 0
  %148 = vmatprep.subr.bf16.mxu0 0
  %149 = vmatpush1.bf16.msra.mxu0 0
  %150 = vmatprep.subr.bf16.mxu0 0
  %151 = vmatpush1.bf16.msra.mxu0 0
  %152 = vmatprep.subr.bf16.mxu0 0
  %153 = vmatpush1.bf16.msra.mxu0 0
  %154 = vmatprep.subr.bf16.mxu0 0
  %155 = vmatpush1.bf16.msra.mxu0 0
  %156 = vmatprep.subr.bf16.mxu0 0
  %157 = vmatpush1.bf16.msra.mxu0 0
  %158 = vmatprep.subr.bf16.mxu0 0
  %159 = vmatpush1.bf16.msra.mxu0 %v142
  %160 = vmatprep.subr.bf16.mxu0 0
  %161 = vmatpush2.bf16.msra.mxu0 0
  %162 = vmatprep.subr.bf16.mxu0 0
  %163 = vmatpush2.bf16.msra.mxu0 0
  %164 = vmatprep.subr.bf16.mxu0 0
  %165 = vmatpush2.bf16.msra.mxu0 0
  %166 = vmatprep.subr.bf16.mxu0 0
  %167 = vmatpush2.bf16.msra.mxu0 0
  %168 = vmatprep.subr.bf16.mxu0 0
  %169 = vmatpush2.bf16.msra.mxu0 0
  %170 = vmatprep.subr.bf16.mxu0 0
  %171 = vmatpush2.bf16.msra.mxu0 0
  %172 = vmatprep.subr.bf16.mxu0 0
  %173 = vmatpush2.bf16.msra.mxu0 0
  %174 = vmatprep.subr.bf16.mxu0 0
  %175 = vmatpush2.bf16.msra.mxu0 0
  %176 = vmatprep.mubr.bf16.mxu0 0
  %177 = vmatmul.mubr.bf16.gmra.mxu0 %v129
  %v178 = vpop.f32.mrf.mxu0
  %v179 = vadd.f32 %v70, %v178
  %v180 = vpop.f32.mrf.mxu0
  %v181 = vpop.f32.mrf.mxu0
  %v182 = vadd.f32 %v75, %v181
  %v183 = vpop.f32.mrf.mxu0
  %184 = vmatprep.mubr.bf16.mxu0 0
  %185 = vmatmul.mubr.bf16.gmra.mxu0 %v132
  %v186 = vpop.f32.mrf.mxu0
  %v187 = vadd.f32 %v80, %v186
  %v188 = vpop.f32.mrf.mxu0
  %v189 = vpop.f32.mrf.mxu0
  %v190 = vadd.f32 %v85, %v189
  %v191 = vpop.f32.mrf.mxu0
  %192 = vmatprep.mubr.bf16.mxu0 0
  %193 = vmatmul.mubr.bf16.gmra.mxu0 %v135
  %v194 = vpop.f32.mrf.mxu0
  %v195 = vadd.f32 %v90, %v194
  %v196 = vpop.f32.mrf.mxu0
  %v197 = vpop.f32.mrf.mxu0
  %v198 = vadd.f32 %v95, %v197
  %v199 = vpop.f32.mrf.mxu0
  %200 = vmatprep.mubr.bf16.mxu0 0
  %201 = vmatmul.mubr.bf16.gmra.mxu0 %v138
  %v202 = vpop.f32.mrf.mxu0
  %v203 = vadd.f32 %v100, %v202
  %v204 = vpop.f32.mrf.mxu0
  %v205 = vpop.f32.mrf.mxu0
  %v206 = vadd.f32 %v105, %v205
  %v207 = vpop.f32.mrf.mxu0
  %208 = vdwg.mxu0
  %v209 = vmax.f32 %v179, 0.0
  %v210 = vmax.f32 %v182, 0.0
  %v211 = vmax.f32 %v187, 0.0
  %v212 = vmax.f32 %v190, 0.0
  %v213 = vmax.f32 %v195, 0.0
  %v214 = vmax.f32 %v198, 0.0
  %v215 = vmax.f32 %v203, 0.0
  %v216 = vmax.f32 %v206, 0.0
  %v217 = vld [vmem:[%s3] sm:$0xf]
  %v218 = vld [vmem:[%s3 + $0x4] sm:$0xf]
  %v219 = vld [vmem:[%s3 + $0x8] sm:$0xf]
  %v220 = vld [vmem:[%s3 + $0xc] sm:$0xf]
  %v221 = vld [vmem:[%s3 + $0x10] sm:$0xf]
  %v222 = vld [vmem:[%s3 + $0x14] sm:$0xf]
  %v223 = vld [vmem:[%s3 + $0x18] sm:$0xf]
  %v224 = vld [vmem:[%s3 + $0x1c] sm:$0xf]
  %v225 = vpack.c.bf16 %v210, %v209
  %v226 = vpack.c.bf16 %v212, %v211
  %v227 = vpack.c.bf16 %v214, %v213
  %v228 = vpack.c.bf16 %v216, %v215
  %v229 = vld [vmem:[%s4] sm:$0xff]
  %v230 = vld [vmem:[%s4 + $0x8] sm:$0xff]
  %v231 = vld [vmem:[%s4 + $0x10] sm:$0xff]
  %v232 = vld [vmem:[%s4 + $0x18] sm:$0xff]
  %v233 = vld [vmem:[%s4 + $0x20] sm:$0xff]
  %v234 = vld [vmem:[%s4 + $0x28] sm:$0xff]
  %v235 = vld [vmem:[%s4 + $0x30] sm:$0xff]
  %v236 = vld [vmem:[%s4 + $0x38] sm:$0xff]
  %238 = vset.pattern.permute.xlu0 0
  %239 = vperm.xlu0 %238, %v229
  %v240 = vpop.permute.xlu0 %239
  %243 = vset.pattern.permute.xlu0 0
  %244 = vperm.xlu0 %243, %v230
  %v245 = vpop.permute.xlu0 %244
  %248 = vset.pattern.permute.xlu0 0
  %249 = vperm.xlu0 %248, %v231
  %v250 = vpop.permute.xlu0 %249
  %253 = vset.pattern.permute.xlu0 0
  %254 = vperm.xlu0 %253, %v232
  %v255 = vpop.permute.xlu0 %254
  %258 = vset.pattern.permute.xlu0 0
  %259 = vperm.xlu0 %258, %v233
  %v260 = vpop.permute.xlu0 %259
  %263 = vset.pattern.permute.xlu0 0
  %264 = vperm.xlu0 %263, %v234
  %v265 = vpop.permute.xlu0 %264
  %268 = vset.pattern.permute.xlu0 0
  %269 = vperm.xlu0 %268, %v235
  %v270 = vpop.permute.xlu0 %269
  %273 = vset.pattern.permute.xlu0 0
  %274 = vperm.xlu0 %273, %v236
  %v275 = vpop.permute.xlu0 %274
  %v285 = vunpack.c.l.b16 %v217
  %v286 = vunpack.c.l.b16 %v218
  %v287 = vunpack.c.l.b16 %v219
  %v288 = vunpack.c.l.b16 %v220
  %v289 = vunpack.c.l.b16 %v221
  %v290 = vunpack.c.l.b16 %v222
  %v291 = vunpack.c.l.b16 %v223
  %v292 = vunpack.c.l.b16 %v224
  %v293 = vpack.c.b16 %v286, %v285
  %v294 = vpack.c.b16 %v288, %v287
  %v295 = vpack.c.b16 %v290, %v289
  %v296 = vpack.c.b16 %v292, %v291
  %vm297 = vcmask 523264
  %v299 = vsel %vm297, %v293, 0
  %v302 = vsel %vm297, %v294, 0
  %v305 = vsel %vm297, %v295, 0
  %v308 = vsel %vm297, %v296, 0
  %310 = vmatprep.subr.bf16.mxu0 0
  %311 = vmatpush1.bf16.msra.mxu0 0
  %312 = vmatprep.subr.bf16.mxu0 0
  %313 = vmatpush1.bf16.msra.mxu0 0
  %314 = vmatprep.subr.bf16.mxu0 0
  %315 = vmatpush1.bf16.msra.mxu0 0
  %316 = vmatprep.subr.bf16.mxu0 0
  %317 = vmatpush1.bf16.msra.mxu0 0
  %318 = vmatprep.subr.bf16.mxu0 0
  %319 = vmatpush1.bf16.msra.mxu0 %v228
  %320 = vmatprep.subr.bf16.mxu0 0
  %321 = vmatpush1.bf16.msra.mxu0 %v227
  %322 = vmatprep.subr.bf16.mxu0 0
  %323 = vmatpush1.bf16.msra.mxu0 %v226
  %324 = vmatprep.subr.bf16.mxu0 0
  %325 = vmatpush1.bf16.msra.mxu0 %v225
  %326 = vmatprep.subr.bf16.mxu0 0
  %327 = vmatpush2.bf16.msra.mxu0 0
  %328 = vmatprep.subr.bf16.mxu0 0
  %329 = vmatpush2.bf16.msra.mxu0 0
  %330 = vmatprep.subr.bf16.mxu0 0
  %331 = vmatpush2.bf16.msra.mxu0 0
  %332 = vmatprep.subr.bf16.mxu0 0
  %333 = vmatpush2.bf16.msra.mxu0 0
  %334 = vmatprep.subr.bf16.mxu0 0
  %335 = vmatpush2.bf16.msra.mxu0 0
  %336 = vmatprep.subr.bf16.mxu0 0
  %337 = vmatpush2.bf16.msra.mxu0 0
  %338 = vmatprep.subr.bf16.mxu0 0
  %339 = vmatpush2.bf16.msra.mxu0 0
  %340 = vmatprep.subr.bf16.mxu0 0
  %341 = vmatpush2.bf16.msra.mxu0 0
  %342 = vmatprep.mubr.bf16.mxu0 0
  %343 = vmatmul.mubr.bf16.gmra.mxu0 %v299
  %v344 = vpop.f32.mrf.mxu0
  %v345 = vadd.f32 %v240, %v344
  %v346 = vpop.f32.mrf.mxu0
  %v347 = vpop.f32.mrf.mxu0
  %v348 = vadd.f32 %v245, %v347
  %v349 = vpop.f32.mrf.mxu0
  %350 = vmatprep.mubr.bf16.mxu0 0
  %351 = vmatmul.mubr.bf16.gmra.mxu0 %v302
  %v352 = vpop.f32.mrf.mxu0
  %v353 = vadd.f32 %v250, %v352
  %v354 = vpop.f32.mrf.mxu0
  %v355 = vpop.f32.mrf.mxu0
  %v356 = vadd.f32 %v255, %v355
  %v357 = vpop.f32.mrf.mxu0
  %358 = vmatprep.mubr.bf16.mxu0 0
  %359 = vmatmul.mubr.bf16.gmra.mxu0 %v305
  %v360 = vpop.f32.mrf.mxu0
  %v361 = vadd.f32 %v260, %v360
  %v362 = vpop.f32.mrf.mxu0
  %v363 = vpop.f32.mrf.mxu0
  %v364 = vadd.f32 %v265, %v363
  %v365 = vpop.f32.mrf.mxu0
  %366 = vmatprep.mubr.bf16.mxu0 0
  %367 = vmatmul.mubr.bf16.gmra.mxu0 %v308
  %v368 = vpop.f32.mrf.mxu0
  %v369 = vadd.f32 %v270, %v368
  %v370 = vpop.f32.mrf.mxu0
  %v371 = vpop.f32.mrf.mxu0
  %v372 = vadd.f32 %v275, %v371
  %v373 = vpop.f32.mrf.mxu0
  %374 = vdwg.mxu0
  %v375 = vmax.f32 %v345, 0.0
  %v376 = vmax.f32 %v348, 0.0
  %v377 = vmax.f32 %v353, 0.0
  %v378 = vmax.f32 %v356, 0.0
  %v379 = vmax.f32 %v361, 0.0
  %v380 = vmax.f32 %v364, 0.0
  %v381 = vmax.f32 %v369, 0.0
  %v382 = vmax.f32 %v372, 0.0
  %v383 = vld [vmem:[%s5] sm:$0x1]
  %v384 = vpack.c.bf16 %v376, %v375
  %v385 = vpack.c.bf16 %v378, %v377
  %v386 = vpack.c.bf16 %v380, %v379
  %v387 = vpack.c.bf16 %v382, %v381
  %v388 = vld [vmem:[#allocation2] sm:$0x1]
  %390 = vset.pattern.permute.xlu0 0
  %391 = vperm.xlu0 %390, %v388
  %v392 = vpop.permute.xlu0 %391
  %v394 = vlaneseq
  %v395 = vshrl.u32 %v394, 7
  %v396 = vsub.s32 0, %v395
  %v397 = vrot.slane %v392, %v396
  %v399 = vsel %vm297, %v383, 0
  %401 = vmatprep.subr.bf16.mxu0 0
  %402 = vmatpush1.bf16.msra.mxu0 0
  %403 = vmatprep.subr.bf16.mxu0 0
  %404 = vmatpush1.bf16.msra.mxu0 0
  %405 = vmatprep.subr.bf16.mxu0 0
  %406 = vmatpush1.bf16.msra.mxu0 0
  %407 = vmatprep.subr.bf16.mxu0 0
  %408 = vmatpush1.bf16.msra.mxu0 0
  %409 = vmatprep.subr.bf16.mxu0 0
  %410 = vmatpush1.bf16.msra.mxu0 %v387
  %411 = vmatprep.subr.bf16.mxu0 0
  %412 = vmatpush1.bf16.msra.mxu0 %v386
  %413 = vmatprep.subr.bf16.mxu0 0
  %414 = vmatpush1.bf16.msra.mxu0 %v385
  %415 = vmatprep.subr.bf16.mxu0 0
  %416 = vmatpush1.bf16.msra.mxu0 %v384
  %417 = vmatprep.subr.bf16.mxu0 0
  %418 = vmatpush2.bf16.msra.mxu0 0
  %419 = vmatprep.subr.bf16.mxu0 0
  %420 = vmatpush2.bf16.msra.mxu0 0
  %421 = vmatprep.subr.bf16.mxu0 0
  %422 = vmatpush2.bf16.msra.mxu0 0
  %423 = vmatprep.subr.bf16.mxu0 0
  %424 = vmatpush2.bf16.msra.mxu0 0
  %425 = vmatprep.subr.bf16.mxu0 0
  %426 = vmatpush2.bf16.msra.mxu0 0
  %427 = vmatprep.subr.bf16.mxu0 0
  %428 = vmatpush2.bf16.msra.mxu0 0
  %429 = vmatprep.subr.bf16.mxu0 0
  %430 = vmatpush2.bf16.msra.mxu0 0
  %431 = vmatprep.subr.bf16.mxu0 0
  %432 = vmatpush2.bf16.msra.mxu0 0
  %433 = vmatprep.mubr.bf16.mxu0 0
  %434 = vmatmul.mubr.bf16.gmra.mxu0 %v399
  %v435 = vpop.f32.mrf.mxu0
  %v436 = vadd.f32 %v397, %v435
  %v437 = vpop.f32.mrf.mxu0
  %v438 = vpop.f32.mrf.mxu0
  %v439 = vpop.f32.mrf.mxu0
  %440 = vdwg.mxu0
  %v441 = vmax.f32 %v436, 0.0
  %442 = vst [vmem:[%s7] sm:$0x1] %v441
  // Predicated region
  $region30: #{mlp_forward.3} parent=0 // pred_check
    _
  $region31: #{mlp_forward.3} parent=0 // pred_check_branch
    %444 = sbr.rel (0) target = $region33
  $region32: #{mlp_forward.3} parent=0 // pred_region
    _
  $region33: #{mlp_forward.3} parent=0 // pred_fallthru
    _
  // Predicated region
  $region34: #{mlp_forward.3} parent=0 // pred_check
    _
  $region35: #{mlp_forward.3} parent=0 // pred_check_branch
    %446 = sbr.rel (0) target = $region37
  $region36: #{mlp_forward.3} parent=0 // pred_region
    _
  $region37: #{mlp_forward.3} parent=0 // pred_fallthru
    _

</llo_original>
